<compile_context>
chip_gen: v7x
topology: tpu7x:2x2x1
jax: 0.10.0
libtpu: 0.0.40
codegen_flags: <defaults>
</compile_context>

<pallas_src>
import jax
import jax.numpy as jnp
from jax.experimental import pallas as pl
from jax.experimental.pallas import tpu as pltpu

LANES = 128


def _const_dma_kernel(enc_ref, out_ref, sem):
    # Single direct HBM->HBM DMA: no VMEM staging, no vreg traffic.
    cp = pltpu.make_async_copy(enc_ref, out_ref, sem)
    cp.start()
    cp.wait()


def enc_learned_const_forward(enc: jax.Array, *, explicit_op: bool = False) -> jax.Array:
    """Pallas implementation of EncLearnedConst.forward(): returns `enc`.

    The module's forward() is identity over the learned parameter, so by default
    no kernel is launched.  Set `explicit_op=True` to materialize the copy as an
    explicit Pallas op (one HBM->HBM DMA).
    """
    if not explicit_op:
        # Highest-value change from the perf review: eliminate the op entirely.
        return enc

    orig_shape = enc.shape
    total = int(enc.size)
    itemsize = jnp.dtype(enc.dtype).itemsize

    # Normalize to a rank-2 view (free metadata reshape on a contiguous array).
    # The DMA path never touches vregs, so lane width is not a perf issue here,
    # but a lane-dense (rows, 128) view keeps the layout friendly for downstream
    # VMEM consumers and avoids scalar/1-D block lowering edge cases.
    if total >= LANES and total % LANES == 0:
        view_shape = (total // LANES, LANES)
    else:
        view_shape = (1, max(total, 1))
    enc_view = enc.reshape(view_shape)

    out = pl.pallas_call(
        _const_dma_kernel,
        out_shape=jax.ShapeDtypeStruct(view_shape, enc.dtype),
        # Raw HBM refs on both sides; the kernel issues exactly one DMA.
        in_specs=[pl.BlockSpec(memory_space=pl.ANY)],
        out_specs=pl.BlockSpec(memory_space=pl.ANY),
        scratch_shapes=[pltpu.SemaphoreType.DMA],
        # Advisory hint: trivially cheap, keep it off the XLA critical path.
        cost_estimate=pl.CostEstimate(
            flops=0, transcendentals=0, bytes_accessed=2 * total * itemsize
        ),
        # Intentionally: no grid, no dimension_semantics, no pl.Buffered — the
        # copy is launch-latency bound on every generation (v5e/v6e/v7x alike).
    )(enc_view)

    return out.reshape(orig_shape)


if __name__ == "__main__":
    # Deterministic "learned" parameter (stand-in for enc.clone().detach()).
    key = jax.random.PRNGKey(0)
    N, C, H, W = 2, 4, 16, 16
    enc_param = jax.random.normal(key, (N, C, H, W), dtype=jnp.float32)

    # Common path: identity, zero kernel launches.
    out_fast = enc_learned_const_forward(enc_param)

    # Explicit-op path: exercise the Pallas HBM->HBM DMA copy kernel once.
    out_kernel = enc_learned_const_forward(enc_param, explicit_op=True)
    out_kernel = jax.block_until_ready(out_kernel)

    # forward() must return the parameter exactly.
    assert out_fast.shape == enc_param.shape and out_fast.dtype == enc_param.dtype
    assert out_kernel.shape == enc_param.shape and out_kernel.dtype == enc_param.dtype
    assert bool(jnp.array_equal(out_fast, enc_param))
    assert bool(jnp.array_equal(out_kernel, enc_param))

    print("KERNEL_OK")
</pallas_src>

<mosaic_0001>
module attributes {stable_mosaic.version = 11 : i64} {
  func.func @_const_dma_kernel(%arg0: memref<16x128xf32, #tpu.memory_space<any>>, %arg1: memref<16x128xf32, #tpu.memory_space<any>>, %arg2: memref<!tpu.dma_semaphore, #tpu.memory_space<semaphore_mem>>) attributes {dimension_semantics = [], scalar_prefetch = 0 : i64, scratch_operands = 1 : i64, tpu.core_type = #tpu.core_type<tc>} {
    tpu.enqueue_dma source(%arg0 : memref<16x128xf32, #tpu.memory_space<any>>) target(%arg1 : memref<16x128xf32, #tpu.memory_space<any>>) target_semaphore(%arg2 : memref<!tpu.dma_semaphore, #tpu.memory_space<semaphore_mem>>)
    tpu.wait_dma2 semaphore(%arg2 : memref<!tpu.dma_semaphore, #tpu.memory_space<semaphore_mem>>) src(%arg0 : memref<16x128xf32, #tpu.memory_space<any>>) dst(%arg1 : memref<16x128xf32, #tpu.memory_space<any>>)
    return
  }
}

</mosaic_0001>

<llo_original>
// kernel: tpu_custom_call.1
$region0: #{tpu_custom_call.1}
  #allocation0 [shape = 'u32[]', space=smem, size = 0x4, offset = 0x4, fixed_abs, tag = 'smem constant byte address 0x4 - core index']
  #allocation1 [shape = 'u32[144,128]{1,0:T(1,128)}', space=vmem, size = 0x12000, scoped, tag = 'internal scratch']
  #allocation2 [shape = 's32[1]{0}', space=sflag, size = 0x4, scoped, tag = 'scratch operand']
  #allocation3 [shape = 's32[]', space=sflag, size = 0x4, offset = 0, fixed_abs, tag = 'sflag constant byte address 0x0 - dummy sync flag']
  #allocation4 [shape = 'u32[0]{0}', space=smem, size = 0, offset = 0, fixed_abs, tag = 'smem constant byte address 0x0 - null']
  %s0 = inlined_call_operand.hbm [shape: f32[16,128], index: 0, kind: input, shape index: {}]
  %s1 = inlined_call_operand.hbm [shape: f32[16,128], index: 1, kind: output, shape index: {}]
  %s2 = sld [smem:[#allocation0]]
  $region2: #{tpu_custom_call.1} parent=0
    _
  %s4 = ssub.s32 1, %s2
  %s5 = scalar_select 0, %s4, %s2
  %s7 = sshll.u32 1, 14
  %s8 = sxor.u32 4294967295, %s7
  %s11 = sshll.u32 3, 24
  %s12 = sxor.u32 4294967295, %s11
  %s13 = sand.u32 0, %s12
  %s15 = sor.u32 %s13, 0
  %18 = dma.general %s0, 256, %s1, [#allocation2], [#allocation3], [#allocation4], %s15, 0
  %s19 = smul.u32 16, 1
  %s20 = sshll.u32 %s19, 4
  %21 = dma.done [#allocation2], %s20
  %22 = vsyncmov [#allocation2]
  %s23 = vpop.sfrf %22
  %p24 = scmp.eq.s32.totalorder %s23, 0
  %p25 = pneg %p24
  %27 = shalt.err (%p25)

</llo_original>
